<compile_context>
chip_gen: v5e
topology: v5e:2x2
jax: 0.10.0
libtpu: 0.0.40
codegen_flags: <defaults>
</compile_context>

<pallas_src>
import functools

import jax
import jax.numpy as jnp
from jax.experimental import pallas as pl
from jax.experimental.pallas import tpu as pltpu

LANE = 128      # lane width (last dim)
SUBLANE = 8     # sublane width (second-to-last dim)
_VMEM_BUDGET = 24 * 1024 * 1024   # conservative, below 32 MiB scoped limit


def _round_up(x: int, m: int) -> int:
    return (x + m - 1) // m * m


# -----------------------------------------------------------------------------
# Kernel: fused multi-layer Linear(+ReLU) on one M-tile.
# refs = (x_ref, w0_ref, b0_ref, w1_ref, b1_ref, ..., o_ref)
#   x_ref: [TM, D0]   w_l: [D_l, D_{l+1}]   b_l: [1, D_{l+1}]   o_ref: [TM, DL]
# -----------------------------------------------------------------------------
def _fused_mlp_kernel(*refs, num_layers: int):
    x_ref = refs[0]
    o_ref = refs[-1]
    h = x_ref[...]
    for layer in range(num_layers):
        w_ref = refs[1 + 2 * layer]
        b_ref = refs[2 + 2 * layer]
        y = jnp.dot(h, w_ref[...], preferred_element_type=jnp.float32)
        y = y + b_ref[...]
        if layer < num_layers - 1:
            y = jnp.maximum(y, 0.0)
        h = y
    o_ref[...] = h.astype(o_ref.dtype)


# -----------------------------------------------------------------------------
# Parameter handling
# -----------------------------------------------------------------------------
def init_mlp_params(key, input_dim, hidden_dim, output_dim, num_layers):
    """Deterministic init mirroring nn.Linear shapes (W: [out, in], b: [out])."""
    h = [hidden_dim] * (num_layers - 1)
    dims_in = [input_dim] + h
    dims_out = h + [output_dim]
    params = []
    for n_in, n_out in zip(dims_in, dims_out):
        key, kw, kb = jax.random.split(key, 3)
        bound = 1.0 / jnp.sqrt(n_in)  # PyTorch default uniform bound
        W = jax.random.uniform(kw, (n_out, n_in), jnp.float32, -bound, bound)
        bias = jax.random.uniform(kb, (n_out,), jnp.float32, -bound, bound)
        params.append((W, bias))
    return params


def prepare_params(params):
    """Pre-transpose weights to [in, out] and zero-pad feature dims to 128.

    Done once; the forward pass never transposes or pads weights again.
    """
    prepared = []
    for W, b in params:
        out_d, in_d = W.shape
        in_p = _round_up(in_d, LANE)
        out_p = _round_up(out_d, LANE)
        Wt = jnp.zeros((in_p, out_p), W.dtype).at[:in_d, :out_d].set(W.T)
        bp = jnp.zeros((1, out_p), b.dtype).at[0, :out_d].set(b)
        prepared.append((Wt, bp))
    return prepared


# -----------------------------------------------------------------------------
# Fused pallas_call wrapper
# -----------------------------------------------------------------------------
def _pick_tm(m, dims_pad, dtype_bytes=4):
    """Largest M-tile (multiple of 8) whose working set fits the VMEM budget."""
    # Weights + biases resident (count x2 conservatively for buffering).
    w_bytes = 2 * sum(
        (dims_pad[i] * dims_pad[i + 1] + dims_pad[i + 1]) * dtype_bytes
        for i in range(len(dims_pad) - 1)
    )
    # Per-row cost: double-buffered x and out tiles + widest intermediate.
    max_d = max(dims_pad)
    per_row = (2 * dims_pad[0] + 2 * dims_pad[-1] + 2 * max_d) * dtype_bytes
    tm = 1024
    while tm > SUBLANE and w_bytes + tm * per_row > _VMEM_BUDGET:
        tm //= 2
    tm = max(tm, SUBLANE)
    tm = min(tm, _round_up(m, SUBLANE))
    return tm


def _fused_mlp_call(x_pad, prepared, tm):
    m_pad, d0 = x_pad.shape
    num_layers = len(prepared)
    dl = prepared[-1][0].shape[1]

    in_specs = [pl.BlockSpec((tm, d0), lambda i: (i, 0))]
    flat_args = [x_pad]
    flops = 0
    w_bytes = 0
    for Wt, bp in prepared:
        k, n = Wt.shape
        # Constant index_map -> weights/bias DMA'd once, stay VMEM-resident.
        in_specs.append(pl.BlockSpec((k, n), lambda i: (0, 0)))
        in_specs.append(pl.BlockSpec((1, n), lambda i: (0, 0)))
        flat_args.append(Wt)
        flat_args.append(bp)
        flops += 2 * m_pad * k * n
        w_bytes += (k * n + n) * 4

    cost = pl.CostEstimate(
        flops=flops,
        transcendentals=0,
        bytes_accessed=m_pad * d0 * 4 + m_pad * dl * 4 + w_bytes,
    )

    kernel = functools.partial(_fused_mlp_kernel, num_layers=num_layers)
    return pl.pallas_call(
        kernel,
        out_shape=jax.ShapeDtypeStruct((m_pad, dl), x_pad.dtype),
        grid_spec=pltpu.PrefetchScalarGridSpec(
            num_scalar_prefetch=0,
            grid=(m_pad // tm,),
            in_specs=in_specs,
            out_specs=pl.BlockSpec((tm, dl), lambda i: (i, 0)),
        ),
        compiler_params=pltpu.CompilerParams(
            dimension_semantics=("parallel",),   # M tiles independent; v7x 2 TCs
            vmem_limit_bytes=32 * 1024 * 1024,
        ),
        cost_estimate=cost,
    )(*flat_args)


@functools.partial(jax.jit, static_argnames=("output_dim",))
def mlp_forward(x, prepared_params, output_dim):
    """x: [..., input_dim] -> [..., output_dim], matching the PyTorch MLP."""
    lead_shape = x.shape[:-1]
    h = x.reshape(-1, x.shape[-1])
    m, d_in = h.shape

    dims_pad = [prepared_params[0][0].shape[0]] + [
        w.shape[1] for w, _ in prepared_params
    ]
    d0_pad = dims_pad[0]

    tm = _pick_tm(m, dims_pad)
    m_pad = _round_up(m, tm)

    # Zero-pad tokens to a tile multiple and features to the lane-padded width
    # (one fused pad op; padded rows/cols contribute zeros and are sliced off).
    x_pad = jnp.zeros((m_pad, d0_pad), h.dtype).at[:m, :d_in].set(h)

    out_pad = _fused_mlp_call(x_pad, prepared_params, tm)
    out = out_pad[:m, :output_dim]
    return out.reshape(*lead_shape, output_dim)


if __name__ == "__main__":
    key = jax.random.PRNGKey(0)
    key, kx = jax.random.split(key)

    batch, seq = 2, 8
    input_dim, hidden_dim, output_dim, num_layers = 16, 32, 8, 3

    x = jax.random.normal(kx, (batch, seq, input_dim), jnp.float32)
    params = init_mlp_params(key, input_dim, hidden_dim, output_dim, num_layers)
    prepared = prepare_params(params)  # pre-transposed + lane-padded, done once

    out = mlp_forward(x, prepared, output_dim)
    jax.block_until_ready(out)

    # Pure-JAX reference of the same semantics (PyTorch layout weights).
    ref = x
    for i, (W, b) in enumerate(params):
        ref = ref @ W.T + b
        if i < num_layers - 1:
            ref = jnp.maximum(ref, 0.0)

    assert out.shape == (batch, seq, output_dim)
    assert jnp.allclose(out, ref, atol=1e-5, rtol=1e-5)

    print("KERNEL_OK")
</pallas_src>

<mosaic_0001>
module attributes {stable_mosaic.version = 11 : i64} {
  func.func @_fused_mlp_kernel(%arg0: i32, %arg1: memref<16x128xf32, #tpu.memory_space<vmem>>, %arg2: memref<128x128xf32, #tpu.memory_space<vmem>>, %arg3: memref<1x128xf32, #tpu.memory_space<vmem>>, %arg4: memref<128x128xf32, #tpu.memory_space<vmem>>, %arg5: memref<1x128xf32, #tpu.memory_space<vmem>>, %arg6: memref<128x128xf32, #tpu.memory_space<vmem>>, %arg7: memref<1x128xf32, #tpu.memory_space<vmem>>, %arg8: memref<16x128xf32, #tpu.memory_space<vmem>>) attributes {dimension_semantics = [#tpu.dimension_semantics<parallel>], iteration_bounds = array<i64: 1>, scalar_prefetch = 0 : i64, scratch_operands = 0 : i64, tpu.core_type = #tpu.core_type<tc>, window_params = [{transform_indices = @transform_0, window_bounds = array<i64: 16, 128>}, {pipeline_mode = #tpu.pipeline_mode<synchronous>, transform_indices = @transform_1, window_bounds = array<i64: 128, 128>}, {pipeline_mode = #tpu.pipeline_mode<synchronous>, transform_indices = @transform_2, window_bounds = array<i64: 1, 128>}, {pipeline_mode = #tpu.pipeline_mode<synchronous>, transform_indices = @transform_3, window_bounds = array<i64: 128, 128>}, {pipeline_mode = #tpu.pipeline_mode<synchronous>, transform_indices = @transform_4, window_bounds = array<i64: 1, 128>}, {pipeline_mode = #tpu.pipeline_mode<synchronous>, transform_indices = @transform_5, window_bounds = array<i64: 128, 128>}, {pipeline_mode = #tpu.pipeline_mode<synchronous>, transform_indices = @transform_6, window_bounds = array<i64: 1, 128>}, {transform_indices = @transform_7, window_bounds = array<i64: 16, 128>}]} {
    %c0 = arith.constant 0 : index
    %c0_0 = arith.constant 0 : index
    %0 = vector.load %arg1[%c0, %c0_0] : memref<16x128xf32, #tpu.memory_space<vmem>>, vector<16x128xf32>
    %c0_1 = arith.constant 0 : index
    %c0_2 = arith.constant 0 : index
    %1 = vector.load %arg2[%c0_1, %c0_2] : memref<128x128xf32, #tpu.memory_space<vmem>>, vector<128x128xf32>
    %cst = arith.constant dense<0.000000e+00> : vector<16x128xf32>
    %2 = tpu.matmul %0, %1, %cst {dimension_numbers = #tpu.dot_dimension_numbers<[1], [0], [0], [1], [0, 0, 1, 1], [], []>} : vector<16x128xf32>, vector<128x128xf32>, vector<16x128xf32> -> vector<16x128xf32>
    %c0_3 = arith.constant 0 : index
    %c0_4 = arith.constant 0 : index
    %3 = vector.load %arg3[%c0_3, %c0_4] : memref<1x128xf32, #tpu.memory_space<vmem>>, vector<1x128xf32>
    %4 = vector.broadcast %3 : vector<1x128xf32> to vector<16x128xf32>
    %5 = arith.addf %2, %4 : vector<16x128xf32>
    %cst_5 = arith.constant 0.000000e+00 : f32
    %6 = vector.broadcast %cst_5 : f32 to vector<16x128xf32>
    %7 = arith.maximumf %5, %6 : vector<16x128xf32>
    %c0_6 = arith.constant 0 : index
    %c0_7 = arith.constant 0 : index
    %8 = vector.load %arg4[%c0_6, %c0_7] : memref<128x128xf32, #tpu.memory_space<vmem>>, vector<128x128xf32>
    %cst_8 = arith.constant dense<0.000000e+00> : vector<16x128xf32>
    %9 = tpu.matmul %7, %8, %cst_8 {dimension_numbers = #tpu.dot_dimension_numbers<[1], [0], [0], [1], [0, 0, 1, 1], [], []>} : vector<16x128xf32>, vector<128x128xf32>, vector<16x128xf32> -> vector<16x128xf32>
    %c0_9 = arith.constant 0 : index
    %c0_10 = arith.constant 0 : index
    %10 = vector.load %arg5[%c0_9, %c0_10] : memref<1x128xf32, #tpu.memory_space<vmem>>, vector<1x128xf32>
    %11 = vector.broadcast %10 : vector<1x128xf32> to vector<16x128xf32>
    %12 = arith.addf %9, %11 : vector<16x128xf32>
    %cst_11 = arith.constant 0.000000e+00 : f32
    %13 = vector.broadcast %cst_11 : f32 to vector<16x128xf32>
    %14 = arith.maximumf %12, %13 : vector<16x128xf32>
    %c0_12 = arith.constant 0 : index
    %c0_13 = arith.constant 0 : index
    %15 = vector.load %arg6[%c0_12, %c0_13] : memref<128x128xf32, #tpu.memory_space<vmem>>, vector<128x128xf32>
    %cst_14 = arith.constant dense<0.000000e+00> : vector<16x128xf32>
    %16 = tpu.matmul %14, %15, %cst_14 {dimension_numbers = #tpu.dot_dimension_numbers<[1], [0], [0], [1], [0, 0, 1, 1], [], []>} : vector<16x128xf32>, vector<128x128xf32>, vector<16x128xf32> -> vector<16x128xf32>
    %c0_15 = arith.constant 0 : index
    %c0_16 = arith.constant 0 : index
    %17 = vector.load %arg7[%c0_15, %c0_16] : memref<1x128xf32, #tpu.memory_space<vmem>>, vector<1x128xf32>
    %18 = vector.broadcast %17 : vector<1x128xf32> to vector<16x128xf32>
    %19 = arith.addf %16, %18 : vector<16x128xf32>
    %c0_17 = arith.constant 0 : index
    %c0_18 = arith.constant 0 : index
    %20 = vector.load %arg8[%c0_17, %c0_18] : memref<16x128xf32, #tpu.memory_space<vmem>>, vector<16x128xf32>
    tpu.vector_store %arg8[%c0_17, %c0_18], %19 {strides = array<i32>} : memref<16x128xf32, #tpu.memory_space<vmem>>, vector<16x128xf32>,
    return
  }
  func.func @transform_0(%arg0: i32) -> (i32, i32) {
    %c0_i32 = arith.constant 0 : i32
    %c0_i32_0 = arith.constant 0 : i32
    return %arg0, %c0_i32 : i32, i32
  }
  func.func @transform_1(%arg0: i32) -> (i32, i32) {
    %c0_i32 = arith.constant 0 : i32
    %c0_i32_0 = arith.constant 0 : i32
    %c0_i32_1 = arith.constant 0 : i32
    return %c0_i32, %c0_i32_0 : i32, i32
  }
  func.func @transform_2(%arg0: i32) -> (i32, i32) {
    %c0_i32 = arith.constant 0 : i32
    %c0_i32_0 = arith.constant 0 : i32
    %c0_i32_1 = arith.constant 0 : i32
    return %c0_i32, %c0_i32_0 : i32, i32
  }
  func.func @transform_3(%arg0: i32) -> (i32, i32) {
    %c0_i32 = arith.constant 0 : i32
    %c0_i32_0 = arith.constant 0 : i32
    %c0_i32_1 = arith.constant 0 : i32
    return %c0_i32, %c0_i32_0 : i32, i32
  }
  func.func @transform_4(%arg0: i32) -> (i32, i32) {
    %c0_i32 = arith.constant 0 : i32
    %c0_i32_0 = arith.constant 0 : i32
    %c0_i32_1 = arith.constant 0 : i32
    return %c0_i32, %c0_i32_0 : i32, i32
  }
  func.func @transform_5(%arg0: i32) -> (i32, i32) {
    %c0_i32 = arith.constant 0 : i32
    %c0_i32_0 = arith.constant 0 : i32
    %c0_i32_1 = arith.constant 0 : i32
    return %c0_i32, %c0_i32_0 : i32, i32
  }
  func.func @transform_6(%arg0: i32) -> (i32, i32) {
    %c0_i32 = arith.constant 0 : i32
    %c0_i32_0 = arith.constant 0 : i32
    %c0_i32_1 = arith.constant 0 : i32
    return %c0_i32, %c0_i32_0 : i32, i32
  }
  func.func @transform_7(%arg0: i32) -> (i32, i32) {
    %c0_i32 = arith.constant 0 : i32
    %c0_i32_0 = arith.constant 0 : i32
    return %arg0, %c0_i32 : i32, i32
  }
}

</mosaic_0001>

<llo_original>
// kernel: mlp_forward.1
$region0: #{mlp_forward.1}
  #allocation0 [shape = 'u32[]', space=smem, size = 0x4, offset = 0x4, fixed_abs, tag = 'smem constant byte address 0x4 - core index']
  #allocation1 [shape = 'u32[72,128]{1,0:T(1,128)}', space=vmem, size = 0x9000, scoped, tag = 'internal scratch']
  %s0 = inlined_call_operand.vmem [shape: f32[16,128], index: 0, kind: input, shape index: {}]
  %s1 = inlined_call_operand.hbm [shape: f32[128,128], index: 1, kind: input, shape index: {}]
  %s2 = inlined_call_operand.vmem [shape: f32[1,128], index: 2, kind: input, shape index: {}]
  %s3 = inlined_call_operand.hbm [shape: f32[128,128], index: 3, kind: input, shape index: {}]
  %s4 = inlined_call_operand.vmem [shape: f32[1,128], index: 4, kind: input, shape index: {}]
  %s5 = inlined_call_operand.hbm [shape: f32[128,128], index: 5, kind: input, shape index: {}]
  %s6 = inlined_call_operand.vmem [shape: f32[1,128], index: 6, kind: input, shape index: {}]
  %s7 = inlined_call_operand.vmem [shape: f32[16,128], index: 7, kind: output, shape index: {}]
  %s8 = sld [smem:[#allocation0]]
  $region50: #{mlp_forward.1} parent=0
    _
  %s10 = ssub.s32 1, %s8
  %s11 = scalar_select 0, %s10, %s8
  $region1: #{mlp_forward.1} parent=0
    #allocation2 [shape = 'u8[65536]{0}', space=vmem, size = 0x10000, scoped, tag = 'input window, operand 1, single buffered']
    #allocation3 [shape = 's32[1]{0}', space=sflag, size = 0x4, scoped, tag = 'scoped memory for mlp_forward.1']
    #allocation4 [shape = 'u8[65536]{0}', space=vmem, size = 0x10000, scoped, tag = 'input window, operand 3, single buffered']
    #allocation5 [shape = 's32[1]{0}', space=sflag, size = 0x4, scoped, tag = 'scoped memory for mlp_forward.1']
    #allocation6 [shape = 'u8[65536]{0}', space=vmem, size = 0x10000, scoped, tag = 'input window, operand 5, single buffered']
    %12 = vsyncpa [#allocation3], 0
    %13 = vsyncpa [#allocation5], 0
    // Predicated region
    $region2: #{mlp_forward.1} parent=1 // pred_check
      _
    $region3: #{mlp_forward.1} parent=1 // pred_check_branch
      %15 = sbr.rel (0) target = $region5
    $region4: #{mlp_forward.1} parent=1 // pred_region
      _
    $region5: #{mlp_forward.1} parent=1 // pred_fallthru
      _
    // Predicated region
    $region6: #{mlp_forward.1} parent=1 // pred_check
      _
    $region7: #{mlp_forward.1} parent=1 // pred_check_branch
      %17 = sbr.rel (0) target = $region9
    $region8: #{mlp_forward.1} parent=1 // pred_region
      %19 = vsyncadd [#allocation3], 0
      %s20 = sshll.u32 %s1, 4
      %s21 = int_to_ptr.hbm [resolvable:$true] %s20
      %s22 = sshll.u32 [#allocation2], 4
      %s23 = int_to_ptr.vmem [resolvable:$true] %s22
      %28 = dma.hbm_to_vmem [thread:$0]  %s21, 2048, %s23, [#allocation3], 128, 128, 8
    $region9: #{mlp_forward.1} parent=1 // pred_fallthru
      _
    // Predicated region
    $region10: #{mlp_forward.1} parent=1 // pred_check
      _
    $region11: #{mlp_forward.1} parent=1 // pred_check_branch
      %30 = sbr.rel (0) target = $region13
    $region12: #{mlp_forward.1} parent=1 // pred_region
      _
    $region13: #{mlp_forward.1} parent=1 // pred_fallthru
      _
    // Predicated region
    $region14: #{mlp_forward.1} parent=1 // pred_check
      _
    $region15: #{mlp_forward.1} parent=1 // pred_check_branch
      %32 = sbr.rel (0) target = $region17
    $region16: #{mlp_forward.1} parent=1 // pred_region
      %34 = vsyncadd [#allocation5], 0
      %s35 = sshll.u32 %s3, 4
      %s36 = int_to_ptr.hbm [resolvable:$true] %s35
      %s37 = sshll.u32 [#allocation4], 4
      %s38 = int_to_ptr.vmem [resolvable:$true] %s37
      %43 = dma.hbm_to_vmem [thread:$0]  %s36, 2048, %s38, [#allocation5], 128, 128, 8
    $region17: #{mlp_forward.1} parent=1 // pred_fallthru
      _
    // Predicated region
    $region18: #{mlp_forward.1} parent=1 // pred_check
      _
    $region19: #{mlp_forward.1} parent=1 // pred_check_branch
      %45 = sbr.rel (0) target = $region21
    $region20: #{mlp_forward.1} parent=1 // pred_region
      _
    $region21: #{mlp_forward.1} parent=1 // pred_fallthru
      _
    // Predicated region
    $region22: #{mlp_forward.1} parent=1 // pred_check
      _
    $region23: #{mlp_forward.1} parent=1 // pred_check_branch
      %47 = sbr.rel (0) target = $region25
    $region24: #{mlp_forward.1} parent=1 // pred_region
      %49 = vsyncadd [#allocation5], 0
      %s50 = sshll.u32 %s5, 4
      %s51 = int_to_ptr.hbm [resolvable:$true] %s50
      %s52 = sshll.u32 [#allocation6], 4
      %s53 = int_to_ptr.vmem [resolvable:$true] %s52
      %58 = dma.hbm_to_vmem [thread:$0]  %s51, 2048, %s53, [#allocation5], 128, 128, 8
    $region25: #{mlp_forward.1} parent=1 // pred_fallthru
      _
    // Predicated region
    $region26: #{mlp_forward.1} parent=1 // pred_check
      _
    $region27: #{mlp_forward.1} parent=1 // pred_check_branch
      %60 = sbr.rel (0) target = $region29
    $region28: #{mlp_forward.1} parent=1 // pred_region
      _
    $region29: #{mlp_forward.1} parent=1 // pred_fallthru
      _
    // Predicated region
    $region30: #{mlp_forward.1} parent=1 // pred_check
      _
    $region31: #{mlp_forward.1} parent=1 // pred_check_branch
      %62 = sbr.rel (0) target = $region33
    $region32: #{mlp_forward.1} parent=1 // pred_region
      %64 = dma.done [#allocation3], 2048
    $region33: #{mlp_forward.1} parent=1 // pred_fallthru
      _
    // Predicated region
    $region34: #{mlp_forward.1} parent=1 // pred_check
      _
    $region35: #{mlp_forward.1} parent=1 // pred_check_branch
      %66 = sbr.rel (0) target = $region37
    $region36: #{mlp_forward.1} parent=1 // pred_region
      %68 = dma.done [#allocation5], 2048
    $region37: #{mlp_forward.1} parent=1 // pred_fallthru
      _
    // Predicated region
    $region38: #{mlp_forward.1} parent=1 // pred_check
      _
    $region39: #{mlp_forward.1} parent=1 // pred_check_branch
      %70 = sbr.rel (0) target = $region41
    $region40: #{mlp_forward.1} parent=1 // pred_region
      %72 = dma.done [#allocation5], 2048
    $region41: #{mlp_forward.1} parent=1 // pred_fallthru
      _
    %v73 = vld [vmem:[%s0] sm:$0xff]
    %v74 = vld [vmem:[%s0 + $0x8] sm:$0xff]
    %v75 = vld [vmem:[#allocation2] sm:$0xff]
    %v76 = vld [vmem:[#allocation2 + $0x8] sm:$0xff]
    %v77 = vld [vmem:[#allocation2 + $0x10] sm:$0xff]
    %v78 = vld [vmem:[#allocation2 + $0x18] sm:$0xff]
    %v79 = vld [vmem:[#allocation2 + $0x20] sm:$0xff]
    %v80 = vld [vmem:[#allocation2 + $0x28] sm:$0xff]
    %v81 = vld [vmem:[#allocation2 + $0x30] sm:$0xff]
    %v82 = vld [vmem:[#allocation2 + $0x38] sm:$0xff]
    %v83 = vld [vmem:[#allocation2 + $0x40] sm:$0xff]
    %v84 = vld [vmem:[#allocation2 + $0x48] sm:$0xff]
    %v85 = vld [vmem:[#allocation2 + $0x50] sm:$0xff]
    %v86 = vld [vmem:[#allocation2 + $0x58] sm:$0xff]
    %v87 = vld [vmem:[#allocation2 + $0x60] sm:$0xff]
    %v88 = vld [vmem:[#allocation2 + $0x68] sm:$0xff]
    %v89 = vld [vmem:[#allocation2 + $0x70] sm:$0xff]
    %v90 = vld [vmem:[#allocation2 + $0x78] sm:$0xff]
    %v91 = vld [vmem:[%s2] sm:$0x1]
    %v93 = vperm.slane %v91, 0
    %95 = vmatpush.msra.mxu0 %v90
    %96 = vmatpush.msra.mxu0 %v89
    %97 = vmatpush.msra.mxu0 %v88
    %98 = vmatpush.msra.mxu0 %v87
    %99 = vmatpush.msra.mxu0 %v86
    %100 = vmatpush.msra.mxu0 %v85
    %101 = vmatpush.msra.mxu0 %v84
    %102 = vmatpush.msra.mxu0 %v83
    %103 = vmatpush.msra.mxu0 %v82
    %104 = vmatpush.msra.mxu0 %v81
    %105 = vmatpush.msra.mxu0 %v80
    %106 = vmatpush.msra.mxu0 %v79
    %107 = vmatpush.msra.mxu0 %v78
    %108 = vmatpush.msra.mxu0 %v77
    %109 = vmatpush.msra.mxu0 %v76
    %110 = vmatpush.msra.mxu0 %v75
    %111 = vmatmul.f32.gmra.mxu0 %v73
    %v112 = vpop.f32.mrf.mxu0
    %v113 = vadd.f32 %v93, %v112
    %114 = vmatmul.f32.gmra.mxu0 %v74
    %v115 = vpop.f32.mrf.mxu0
    %v116 = vadd.f32 %v93, %v115
    %117 = vdwg.mxu0
    %v118 = vmax.f32 %v113, 0.0
    %v119 = vmax.f32 %v116, 0.0
    %v120 = vld [vmem:[#allocation4] sm:$0xff]
    %v121 = vld [vmem:[#allocation4 + $0x8] sm:$0xff]
    %v122 = vld [vmem:[#allocation4 + $0x10] sm:$0xff]
    %v123 = vld [vmem:[#allocation4 + $0x18] sm:$0xff]
    %v124 = vld [vmem:[#allocation4 + $0x20] sm:$0xff]
    %v125 = vld [vmem:[#allocation4 + $0x28] sm:$0xff]
    %v126 = vld [vmem:[#allocation4 + $0x30] sm:$0xff]
    %v127 = vld [vmem:[#allocation4 + $0x38] sm:$0xff]
    %v128 = vld [vmem:[#allocation4 + $0x40] sm:$0xff]
    %v129 = vld [vmem:[#allocation4 + $0x48] sm:$0xff]
    %v130 = vld [vmem:[#allocation4 + $0x50] sm:$0xff]
    %v131 = vld [vmem:[#allocation4 + $0x58] sm:$0xff]
    %v132 = vld [vmem:[#allocation4 + $0x60] sm:$0xff]
    %v133 = vld [vmem:[#allocation4 + $0x68] sm:$0xff]
    %v134 = vld [vmem:[#allocation4 + $0x70] sm:$0xff]
    %v135 = vld [vmem:[#allocation4 + $0x78] sm:$0xff]
    %v136 = vld [vmem:[%s4] sm:$0x1]
    %v138 = vperm.slane %v136, 0
    %140 = vmatpush.msra.mxu0 %v135
    %141 = vmatpush.msra.mxu0 %v134
    %142 = vmatpush.msra.mxu0 %v133
    %143 = vmatpush.msra.mxu0 %v132
    %144 = vmatpush.msra.mxu0 %v131
    %145 = vmatpush.msra.mxu0 %v130
    %146 = vmatpush.msra.mxu0 %v129
    %147 = vmatpush.msra.mxu0 %v128
    %148 = vmatpush.msra.mxu0 %v127
    %149 = vmatpush.msra.mxu0 %v126
    %150 = vmatpush.msra.mxu0 %v125
    %151 = vmatpush.msra.mxu0 %v124
    %152 = vmatpush.msra.mxu0 %v123
    %153 = vmatpush.msra.mxu0 %v122
    %154 = vmatpush.msra.mxu0 %v121
    %155 = vmatpush.msra.mxu0 %v120
    %156 = vmatmul.f32.gmra.mxu0 %v118
    %v157 = vpop.f32.mrf.mxu0
    %v158 = vadd.f32 %v138, %v157
    %159 = vmatmul.f32.gmra.mxu0 %v119
    %v160 = vpop.f32.mrf.mxu0
    %v161 = vadd.f32 %v138, %v160
    %162 = vdwg.mxu0
    %v163 = vmax.f32 %v158, 0.0
    %v164 = vmax.f32 %v161, 0.0
    %v165 = vld [vmem:[#allocation6] sm:$0xff]
    %v166 = vld [vmem:[#allocation6 + $0x8] sm:$0xff]
    %v167 = vld [vmem:[#allocation6 + $0x10] sm:$0xff]
    %v168 = vld [vmem:[#allocation6 + $0x18] sm:$0xff]
    %v169 = vld [vmem:[#allocation6 + $0x20] sm:$0xff]
    %v170 = vld [vmem:[#allocation6 + $0x28] sm:$0xff]
    %v171 = vld [vmem:[#allocation6 + $0x30] sm:$0xff]
    %v172 = vld [vmem:[#allocation6 + $0x38] sm:$0xff]
    %v173 = vld [vmem:[#allocation6 + $0x40] sm:$0xff]
    %v174 = vld [vmem:[#allocation6 + $0x48] sm:$0xff]
    %v175 = vld [vmem:[#allocation6 + $0x50] sm:$0xff]
    %v176 = vld [vmem:[#allocation6 + $0x58] sm:$0xff]
    %v177 = vld [vmem:[#allocation6 + $0x60] sm:$0xff]
    %v178 = vld [vmem:[#allocation6 + $0x68] sm:$0xff]
    %v179 = vld [vmem:[#allocation6 + $0x70] sm:$0xff]
    %v180 = vld [vmem:[#allocation6 + $0x78] sm:$0xff]
    %v181 = vld [vmem:[%s6] sm:$0x1]
    %v183 = vperm.slane %v181, 0
    %185 = vmatpush.msra.mxu0 %v180
    %186 = vmatpush.msra.mxu0 %v179
    %187 = vmatpush.msra.mxu0 %v178
    %188 = vmatpush.msra.mxu0 %v177
    %189 = vmatpush.msra.mxu0 %v176
    %190 = vmatpush.msra.mxu0 %v175
    %191 = vmatpush.msra.mxu0 %v174
    %192 = vmatpush.msra.mxu0 %v173
    %193 = vmatpush.msra.mxu0 %v172
    %194 = vmatpush.msra.mxu0 %v171
    %195 = vmatpush.msra.mxu0 %v170
    %196 = vmatpush.msra.mxu0 %v169
    %197 = vmatpush.msra.mxu0 %v168
    %198 = vmatpush.msra.mxu0 %v167
    %199 = vmatpush.msra.mxu0 %v166
    %200 = vmatpush.msra.mxu0 %v165
    %201 = vmatmul.f32.gmra.mxu0 %v163
    %v202 = vpop.f32.mrf.mxu0
    %v203 = vadd.f32 %v183, %v202
    %204 = vmatmul.f32.gmra.mxu0 %v164
    %v205 = vpop.f32.mrf.mxu0
    %v206 = vadd.f32 %v183, %v205
    %207 = vdwg.mxu0
    %208 = vst [vmem:[%s7] sm:$0xff] %v203
    %209 = vst [vmem:[%s7 + $0x8] sm:$0xff] %v206
    // Predicated region
    $region42: #{mlp_forward.1} parent=1 // pred_check
      _
    $region43: #{mlp_forward.1} parent=1 // pred_check_branch
      %211 = sbr.rel (0) target = $region45
    $region44: #{mlp_forward.1} parent=1 // pred_region
      _
    $region45: #{mlp_forward.1} parent=1 // pred_fallthru
      _
    // Predicated region
    $region46: #{mlp_forward.1} parent=1 // pred_check
      _
    $region47: #{mlp_forward.1} parent=1 // pred_check_branch
      %213 = sbr.rel (0) target = $region49
    $region48: #{mlp_forward.1} parent=1 // pred_region
      _
    $region49: #{mlp_forward.1} parent=1 // pred_fallthru
      _
    %214 = vsyncpa [#allocation3], 1
    %215 = vsyncpa [#allocation5], 1

</llo_original>
